<compile_context>
chip_gen: v7x
topology: tpu7x:2x2x1
jax: 0.10.0
libtpu: 0.0.40
codegen_flags: <defaults>
</compile_context>

<pallas_src>
import functools

import jax
import jax.numpy as jnp
from jax.experimental import pallas as pl
from jax.experimental.pallas import tpu as pltpu


# ---------------------------------------------------------------------------
# generation-aware configuration
# ---------------------------------------------------------------------------

def _get_config():
    """Tile targets / VMEM limit / exp dtype keyed on the TPU generation."""
    try:
        kind = jax.devices()[0].device_kind.lower()
    except Exception:  # pragma: no cover - be robust if device query fails
        kind = ""
    if ("v5" in kind) or ("v6" in kind):
        # 128 MiB physical VMEM: go big (halves K/V HBM re-reads, moves the
        # mem-bound projections toward the HBM roofline).
        return dict(attn_tq=512, attn_tkv=256,
                    lin_tm=512, lin_tn=512, lin_tk=1024,
                    vmem_limit=64 * 1024 * 1024,
                    bf16_exp=("v5" not in kind))   # v5e has no bf16 EUP
    # v7x (64 MiB physical VMEM) and unknown chips: stay modest so the
    # batched-all-heads f32 score/prob temporaries + double-buffered tiles fit.
    return dict(attn_tq=256, attn_tkv=256,
                lin_tm=256, lin_tn=512, lin_tk=1024,
                vmem_limit=48 * 1024 * 1024,
                bf16_exp=True)


def _pick_tile(dim, target, align):
    """Largest tile <= target that divides `dim` and is `align`-aligned.
    Falls back to the full dim (always a legal block shape)."""
    if dim <= target:
        return dim
    t = (target // align) * align
    while t >= align:
        if dim % t == 0:
            return t
        t -= align
    return dim


def _sublane(dtype):
    # bf16 packs 16 rows per vreg sublane group; f32 packs 8.
    return 16 if dtype == jnp.bfloat16 else 8


# ---------------------------------------------------------------------------
# tiled linear (y = x @ W + b) -- QKV and output projections
# ---------------------------------------------------------------------------

def _linear_kernel(x_ref, w_ref, b_ref, o_ref):
    # Single K tile: no reduction axis, no accumulator scratch.
    o_ref[...] = (jnp.dot(x_ref[...], w_ref[...],
                          preferred_element_type=jnp.float32)
                  + b_ref[...].astype(jnp.float32)).astype(o_ref.dtype)


def _linear_acc_kernel(x_ref, w_ref, b_ref, o_ref, acc_ref):
    k = pl.program_id(2)

    @pl.when(k == 0)
    def _():
        acc_ref[...] = jnp.zeros(acc_ref.shape, acc_ref.dtype)

    acc_ref[...] += jnp.dot(x_ref[...], w_ref[...],
                            preferred_element_type=jnp.float32)

    @pl.when(k == pl.num_programs(2) - 1)
    def _():
        o_ref[...] = (acc_ref[...] + b_ref[...].astype(jnp.float32)
                      ).astype(o_ref.dtype)


def _linear(x, w, b, cfg):
    """x: (M, K), w: (K, N), b: (1, N) -> (M, N) in x.dtype (f32 accumulation)."""
    M, K = x.shape
    _, N = w.shape
    tm = _pick_tile(M, cfg["lin_tm"], _sublane(x.dtype))
    tn = _pick_tile(N, cfg["lin_tn"], 128)
    tk = _pick_tile(K, cfg["lin_tk"], 128)

    params = pltpu.CompilerParams(
        dimension_semantics=("parallel", "parallel") if tk == K
        else ("parallel", "parallel", "arbitrary"),
        vmem_limit_bytes=cfg["vmem_limit"],
    )

    if tk == K:
        return pl.pallas_call(
            _linear_kernel,
            out_shape=jax.ShapeDtypeStruct((M, N), x.dtype),
            grid_spec=pltpu.PrefetchScalarGridSpec(
                num_scalar_prefetch=0,
                grid=(M // tm, N // tn),
                in_specs=[
                    pl.BlockSpec((tm, K), lambda i, j: (i, 0)),
                    pl.BlockSpec((K, tn), lambda i, j: (0, j)),
                    pl.BlockSpec((1, tn), lambda i, j: (0, j)),
                ],
                out_specs=pl.BlockSpec((tm, tn), lambda i, j: (i, j)),
            ),
            compiler_params=params,
        )(x, w, b)

    return pl.pallas_call(
        _linear_acc_kernel,
        out_shape=jax.ShapeDtypeStruct((M, N), x.dtype),
        grid_spec=pltpu.PrefetchScalarGridSpec(
            num_scalar_prefetch=0,
            grid=(M // tm, N // tn, K // tk),
            in_specs=[
                pl.BlockSpec((tm, tk), lambda i, j, k: (i, k)),
                pl.BlockSpec((tk, tn), lambda i, j, k: (k, j)),
                pl.BlockSpec((1, tn), lambda i, j, k: (0, j)),
            ],
            out_specs=pl.BlockSpec((tm, tn), lambda i, j, k: (i, j)),
            scratch_shapes=[pltpu.VMEM((tm, tn), jnp.float32)],
        ),
        compiler_params=params,
    )(x, w, b)


# ---------------------------------------------------------------------------
# flash-attention core
# ---------------------------------------------------------------------------

def _heads_major(ref):
    """(1, t, 1, nh, d) input block -> (nh, t, d) head-major tile."""
    x = ref[...]
    t, nh, d = x.shape[1], x.shape[3], x.shape[4]
    x = x.reshape(t, nh, d)            # dropping unit dims: layout-free
    return jnp.swapaxes(x, 0, 1)       # in-VMEM permute (no HBM round trip)


def _flash_attn_kernel(*refs, has_mask, exp_dtype):
    if has_mask:
        q_ref, k_ref, v_ref, madd_ref, o_ref, q_sc, m_sc, l_sc, acc_sc = refs
    else:
        q_ref, k_ref, v_ref, o_ref, q_sc, m_sc, l_sc, acc_sc = refs
        madd_ref = None

    ki = pl.program_id(2)

    @pl.when(ki == 0)
    def _():
        # Head-major copy of the resident Q tile, done ONCE per (batch,q-tile)
        # instead of per kv step.  The softmax scale is already folded into
        # the QKV projection weights, so no per-step rescale of Q either.
        q_sc[...] = _heads_major(q_ref)
        m_sc[...] = jnp.full(m_sc.shape, -jnp.inf, dtype=m_sc.dtype)
        l_sc[...] = jnp.zeros(l_sc.shape, l_sc.dtype)
        acc_sc[...] = jnp.zeros(acc_sc.shape, acc_sc.dtype)

    k = _heads_major(k_ref)            # (nh, tkv, d)
    v = _heads_major(v_ref)            # (nh, tkv, d)

    # Heads batched; both operands contract their minor dim (no K transpose
    # feeding the MXU).
    s = jnp.einsum("hqd,hkd->hqk", q_sc[...], k,
                   preferred_element_type=jnp.float32)      # (nh, tq, tkv) f32

    if has_mask:
        # madd_ref is a (1, tkv) additive key mask (0 for keep, -1e30 masked).
        s = s + madd_ref[...]

    m_prev = m_sc[...]
    m_new = jnp.maximum(m_prev, s.max(axis=-1, keepdims=True))
    alpha = jnp.exp(m_prev - m_new)

    # The big exp is the saturating EUP op of the inner loop; run it in bf16
    # on v6e/v7x (bookkeeping and the row-sum stay f32).
    p = jnp.exp((s - m_new).astype(exp_dtype))

    l_sc[...] = alpha * l_sc[...] + jnp.sum(p, axis=-1, keepdims=True,
                                            dtype=jnp.float32)
    acc_sc[...] = alpha * acc_sc[...] + jnp.einsum(
        "hqk,hkd->hqd", p.astype(v.dtype), v,
        preferred_element_type=jnp.float32)
    m_sc[...] = m_new

    @pl.when(ki == pl.num_programs(2) - 1)
    def _():
        inv_l = pl.reciprocal(l_sc[...], approx=True)        # EUP slot
        out = (acc_sc[...] * inv_l).astype(o_ref.dtype)      # (nh, tq, d)
        # One dense store of the whole tile; the (B,S,nh,d) output buffer is
        # contiguous in HBM exactly as the (B,S,H) activation the out-proj
        # consumes, so the reshape outside is metadata only.
        o_ref[0] = jnp.swapaxes(out, 0, 1)                   # (tq, nh, d)


def _flash_attention(qkv, mask_add, *, batch, seq, num_heads, head_dim, cfg):
    """qkv: (B, S, 3, nh, d).  mask_add: (B, 1, S) additive f32 mask or None.
    Returns (B, S, nh, d); heads are contiguous so .reshape(B, S, H) is free."""
    B, S, nh, d = batch, seq, num_heads, head_dim
    dtype = qkv.dtype
    sub = _sublane(dtype)

    tq = _pick_tile(S, cfg["attn_tq"], sub)
    tkv = _pick_tile(S, cfg["attn_tkv"], 128)
    # Keep >= 2 parallel grid iterations so both v7x TensorCores get work.
    while B * (S // tq) < 2 and tq % 16 == 0:
        tq //= 2

    exp_dtype = (jnp.bfloat16
                 if (cfg["bf16_exp"] and dtype == jnp.bfloat16)
                 else jnp.float32)

    has_mask = mask_add is not None
    kernel = functools.partial(_flash_attn_kernel, has_mask=has_mask,
                               exp_dtype=exp_dtype)

    # Q/K/V are three views of the SAME (B, S, 3, nh, d) array: the index_maps
    # pick the 0/1/2 plane of the size-3 axis, so no XLA transpose/copy of the
    # qkv activation is ever materialized in HBM.
    in_specs = [
        pl.BlockSpec((1, tq, 1, nh, d), lambda b, qi, ki: (b, qi, 0, 0, 0)),
        pl.BlockSpec((1, tkv, 1, nh, d), lambda b, qi, ki: (b, ki, 1, 0, 0)),
        pl.BlockSpec((1, tkv, 1, nh, d), lambda b, qi, ki: (b, ki, 2, 0, 0)),
    ]
    operands = [qkv, qkv, qkv]
    if has_mask:
        in_specs.append(
            pl.BlockSpec((1, 1, tkv), lambda b, qi, ki: (b, 0, ki)))
        operands.append(mask_add)

    return pl.pallas_call(
        kernel,
        out_shape=jax.ShapeDtypeStruct((B, S, nh, d), dtype),
        grid_spec=pltpu.PrefetchScalarGridSpec(
            num_scalar_prefetch=0,
            grid=(B, S // tq, S // tkv),
            in_specs=in_specs,
            out_specs=pl.BlockSpec((1, tq, nh, d),
                                   lambda b, qi, ki: (b, qi, 0, 0)),
            scratch_shapes=[
                pltpu.VMEM((nh, tq, d), dtype),        # head-major Q copy
                pltpu.VMEM((nh, tq, 1), jnp.float32),  # running max m
                pltpu.VMEM((nh, tq, 1), jnp.float32),  # running denom l
                pltpu.VMEM((nh, tq, d), jnp.float32),  # running numerator
            ],
        ),
        compiler_params=pltpu.CompilerParams(
            dimension_semantics=("parallel", "parallel", "arbitrary"),
            vmem_limit_bytes=cfg["vmem_limit"],
        ),
    )(*operands)


# ---------------------------------------------------------------------------
# full module forward
# ---------------------------------------------------------------------------

def multi_head_self_attention(x, wqkv, bqkv, wo, bo, *, num_heads,
                              attention_mask=None,
                              compute_dtype=jnp.bfloat16):
    """x: (B, S, H). wqkv: (H, 3H). bqkv: (1, 3H). wo: (H, H). bo: (1, H).
    Weights are pre-transposed so y = x @ W + b matches nn.Linear.
    attention_mask: optional (B, S); keys where mask == 0 are ignored.
    compute_dtype defaults to bf16 (f32 accumulation / softmax in-kernel)."""
    out_dtype = x.dtype
    B, S, H = x.shape
    assert H % num_heads == 0
    d = H // num_heads
    scale = float(d) ** -0.5

    # Fold the softmax scale into the Q third of the projection (one-time,
    # XLA-level) instead of rescaling the resident Q tile every kv step.
    wqkv = wqkv.at[:, :H].multiply(scale)
    bqkv = bqkv.at[:, :H].multiply(scale)

    if compute_dtype is not None:
        x, wqkv, bqkv, wo, bo = (t.astype(compute_dtype)
                                 for t in (x, wqkv, bqkv, wo, bo))

    cfg = _get_config()
    M = B * S

    # 1) fused QKV projection.
    qkv = _linear(x.reshape(M, H), wqkv, bqkv, cfg)          # (M, 3H)
    # Metadata-only reshape -- no HBM transpose; the attention kernel's
    # BlockSpecs select the Q/K/V planes of the size-3 axis directly.
    qkv = qkv.reshape(B, S, 3, num_heads, d)

    mask_add = None
    if attention_mask is not None:
        assert attention_mask.shape == (B, S)
        mask_add = jnp.where(attention_mask == 0,
                             jnp.float32(-1e30),
                             jnp.float32(0.0)).reshape(B, 1, S)

    # 2) flash-attention core -> (B, S, nh, d); heads already contiguous.
    attn = _flash_attention(qkv, mask_add, batch=B, seq=S,
                            num_heads=num_heads, head_dim=d, cfg=cfg)

    # 3) output projection.
    out = _linear(attn.reshape(M, H), wo, bo, cfg).reshape(B, S, H)
    return out.astype(out_dtype)


# ---------------------------------------------------------------------------
# pure-JAX reference (mirrors the PyTorch forward exactly)
# ---------------------------------------------------------------------------

def _reference(x, wqkv, bqkv, wo, bo, *, num_heads, attention_mask=None):
    B, S, H = x.shape
    d = H // num_heads
    qkv = x @ wqkv + bqkv                                    # (B, S, 3H)
    qkv = qkv.reshape(B, S, 3, num_heads, d)
    q, k, v = jnp.transpose(qkv, (2, 0, 3, 1, 4))            # each (B, nh, S, d)
    scores = jnp.einsum("bhqd,bhkd->bhqk", q, k) * (d ** -0.5)
    if attention_mask is not None:
        scores = jnp.where(attention_mask[:, None, None, :] == 0,
                           -jnp.inf, scores)
    attn = jax.nn.softmax(scores, axis=-1)
    out = jnp.einsum("bhqk,bhkd->bhqd", attn, v)             # (B, nh, S, d)
    out = jnp.transpose(out, (0, 2, 1, 3)).reshape(B, S, H)
    return out @ wo + bo


if __name__ == "__main__":
    def make_params(key, H):
        kx, kw1, kb1, kw2, kb2 = jax.random.split(key, 5)
        wqkv = jax.random.normal(kw1, (H, 3 * H), jnp.float32) * (H ** -0.5)
        bqkv = jax.random.normal(kb1, (1, 3 * H), jnp.float32) * 0.02
        wo = jax.random.normal(kw2, (H, H), jnp.float32) * (H ** -0.5)
        bo = jax.random.normal(kb2, (1, H), jnp.float32) * 0.02
        return kx, (wqkv, bqkv, wo, bo)

    # --- small smoke test (every block equals the full array) --------------
    B, S, H, nh = 2, 8, 32, 4
    kx, params = make_params(jax.random.PRNGKey(0), H)
    x = jax.random.normal(kx, (B, S, H), jnp.float32)
    ref = _reference(x, *params, num_heads=nh)

    out = jax.block_until_ready(
        multi_head_self_attention(x, *params, num_heads=nh,
                                  compute_dtype=jnp.float32))
    assert out.shape == (B, S, H)
    err = float(jnp.max(jnp.abs(out - ref)))
    assert err < 1e-2, f"small f32 mismatch vs reference: {err}"

    out_bf16 = jax.block_until_ready(
        multi_head_self_attention(x, *params, num_heads=nh))  # default bf16
    assert out_bf16.shape == (B, S, H)
    assert bool(jnp.all(jnp.isfinite(out_bf16)))
    assert float(jnp.max(jnp.abs(out_bf16 - ref))) < 2e-1, "small bf16 mismatch"

    # --- mid-size test: exercises real tiling, multi-tile online softmax and
    # the key-padding attention_mask path -----------------------------------
    B, S, H, nh = 2, 512, 256, 4
    kx, params = make_params(jax.random.PRNGKey(1), H)
    x = jax.random.normal(kx, (B, S, H), jnp.float32)
    lengths = jnp.array([S, S // 4])
    mask = (jnp.arange(S)[None, :] < lengths[:, None]).astype(jnp.int32)

    ref_m = _reference(x, *params, num_heads=nh, attention_mask=mask)
    out_m = jax.block_until_ready(
        multi_head_self_attention(x, *params, num_heads=nh,
                                  attention_mask=mask,
                                  compute_dtype=jnp.float32))
    err_m = float(jnp.max(jnp.abs(out_m - ref_m)))
    assert err_m < 3e-2, f"mid f32+mask mismatch vs reference: {err_m}"

    ref2 = _reference(x, *params, num_heads=nh)
    out2 = jax.block_until_ready(
        multi_head_self_attention(x, *params, num_heads=nh))  # default bf16
    err2 = float(jnp.max(jnp.abs(out2 - ref2)))
    assert err2 < 2e-1, f"mid bf16 mismatch vs reference: {err2}"

    print("KERNEL_OK")
</pallas_src>

<mosaic_0001>
module attributes {stable_mosaic.version = 11 : i64} {
  func.func @_linear_kernel(%arg0: i32, %arg1: i32, %arg2: memref<16x32xf32, #tpu.memory_space<vmem>>, %arg3: memref<32x96xf32, #tpu.memory_space<vmem>>, %arg4: memref<1x96xf32, #tpu.memory_space<vmem>>, %arg5: memref<16x96xf32, #tpu.memory_space<vmem>>) attributes {dimension_semantics = [#tpu.dimension_semantics<parallel>, #tpu.dimension_semantics<parallel>], iteration_bounds = array<i64: 1, 1>, scalar_prefetch = 0 : i64, scratch_operands = 0 : i64, tpu.core_type = #tpu.core_type<tc>, window_params = [{transform_indices = @transform_0, window_bounds = array<i64: 16, 32>}, {transform_indices = @transform_1, window_bounds = array<i64: 32, 96>}, {transform_indices = @transform_2, window_bounds = array<i64: 1, 96>}, {transform_indices = @transform_3, window_bounds = array<i64: 16, 96>}]} {
    %c0 = arith.constant 0 : index
    %c0_0 = arith.constant 0 : index
    %0 = vector.load %arg2[%c0, %c0_0] : memref<16x32xf32, #tpu.memory_space<vmem>>, vector<16x32xf32>
    %c0_1 = arith.constant 0 : index
    %c0_2 = arith.constant 0 : index
    %1 = vector.load %arg3[%c0_1, %c0_2] : memref<32x96xf32, #tpu.memory_space<vmem>>, vector<32x96xf32>
    %cst = arith.constant dense<0.000000e+00> : vector<16x96xf32>
    %2 = tpu.matmul %0, %1, %cst {dimension_numbers = #tpu.dot_dimension_numbers<[1], [0], [0], [1], [0, 0, 1, 1], [], []>} : vector<16x32xf32>, vector<32x96xf32>, vector<16x96xf32> -> vector<16x96xf32>
    %c0_3 = arith.constant 0 : index
    %c0_4 = arith.constant 0 : index
    %3 = vector.load %arg4[%c0_3, %c0_4] : memref<1x96xf32, #tpu.memory_space<vmem>>, vector<1x96xf32>
    %4 = vector.broadcast %3 : vector<1x96xf32> to vector<16x96xf32>
    %5 = arith.addf %2, %4 : vector<16x96xf32>
    %c0_5 = arith.constant 0 : index
    %c0_6 = arith.constant 0 : index
    %6 = vector.load %arg5[%c0_5, %c0_6] : memref<16x96xf32, #tpu.memory_space<vmem>>, vector<16x96xf32>
    tpu.vector_store %arg5[%c0_5, %c0_6], %5 {strides = array<i32>} : memref<16x96xf32, #tpu.memory_space<vmem>>, vector<16x96xf32>,
    return
  }
  func.func @transform_0(%arg0: i32, %arg1: i32) -> (i32, i32) {
    %c0_i32 = arith.constant 0 : i32
    %c0_i32_0 = arith.constant 0 : i32
    return %arg0, %c0_i32 : i32, i32
  }
  func.func @transform_1(%arg0: i32, %arg1: i32) -> (i32, i32) {
    %c0_i32 = arith.constant 0 : i32
    %c0_i32_0 = arith.constant 0 : i32
    return %c0_i32, %arg1 : i32, i32
  }
  func.func @transform_2(%arg0: i32, %arg1: i32) -> (i32, i32) {
    %c0_i32 = arith.constant 0 : i32
    %c0_i32_0 = arith.constant 0 : i32
    return %c0_i32, %arg1 : i32, i32
  }
  func.func @transform_3(%arg0: i32, %arg1: i32) -> (i32, i32) {
    %c0_i32 = arith.constant 0 : i32
    return %arg0, %arg1 : i32, i32
  }
}

</mosaic_0001>

<llo_original>
// kernel: tpu_custom_call.1
$region0: #{tpu_custom_call.1}
  #allocation0 [shape = 'u32[]', space=smem, size = 0x4, offset = 0x4, fixed_abs, tag = 'smem constant byte address 0x4 - core index']
  #allocation1 [shape = 'u32[144,128]{1,0:T(1,128)}', space=vmem, size = 0x12000, scoped, tag = 'internal scratch']
  %s0 = inlined_call_operand.hbm [shape: f32[16,32], index: 0, kind: input, shape index: {}]
  %s1 = inlined_call_operand.hbm [shape: f32[32,96], index: 1, kind: input, shape index: {}]
  %s2 = inlined_call_operand.vmem [shape: f32[1,96], index: 2, kind: input, shape index: {}]
  %s3 = inlined_call_operand.hbm [shape: f32[16,96], index: 3, kind: output, shape index: {}]
  %s4 = sld [smem:[#allocation0]]
  $region30: #{tpu_custom_call.1} parent=0
    _
  %s6 = ssub.s32 1, %s4
  %s7 = scalar_select 0, %s6, %s4
  $region1: #{tpu_custom_call.1} parent=0
    #allocation2 [shape = 'u8[8192]{0}', space=vmem, size = 0x2000, scoped, tag = 'input window, operand 0, single buffered']
    #allocation3 [shape = 's32[1]{0}', space=sflag, size = 0x4, scoped, tag = 'scoped memory for tpu_custom_call.1']
    #allocation4 [shape = 's32[1]{0}', space=sflag, size = 0x4, scoped, tag = 'scoped memory for tpu_custom_call.1']
    #allocation5 [shape = 'u8[16384]{0}', space=vmem, size = 0x4000, scoped, tag = 'input window, operand 1, single buffered']
    #allocation6 [shape = 's32[1]{0}', space=sflag, size = 0x4, scoped, tag = 'scoped memory for tpu_custom_call.1']
    #allocation7 [shape = 'u8[8192]{0}', space=vmem, size = 0x2000, scoped, tag = 'output window, operand 0, single buffered']
    %8 = vsyncpa [#allocation3], 0
    %9 = vsyncpa [#allocation6], 0
    %10 = vsyncpa [#allocation4], 0
    // Predicated region
    $region2: #{tpu_custom_call.1} parent=1 // pred_check
      _
    $region3: #{tpu_custom_call.1} parent=1 // pred_check_branch
      %12 = sbr.rel (0) target = $region5
    $region4: #{tpu_custom_call.1} parent=1 // pred_region
      %s14 = ssub.s32 256, 256
      %15 = vsyncadd [#allocation3], %s14
      %s16 = sshll.u32 [#allocation2], 4
      %s17 = int_to_ptr.vmem [resolvable:$true] %s16
      %22 = dma.hbm_to_vmem [thread:$0]  %s0, 256, %s17, [#allocation3], 128, 128, 8
    $region5: #{tpu_custom_call.1} parent=1 // pred_fallthru
      _
    // Predicated region
    $region6: #{tpu_custom_call.1} parent=1 // pred_check
      _
    $region7: #{tpu_custom_call.1} parent=1 // pred_check_branch
      %24 = sbr.rel (0) target = $region9
    $region8: #{tpu_custom_call.1} parent=1 // pred_region
      %s26 = ssub.s32 512, 512
      %27 = vsyncadd [#allocation6], %s26
      %s28 = sshll.u32 [#allocation5], 4
      %s29 = int_to_ptr.vmem [resolvable:$true] %s28
      %34 = dma.hbm_to_vmem [thread:$0]  %s1, 512, %s29, [#allocation6], 128, 128, 8
    $region9: #{tpu_custom_call.1} parent=1 // pred_fallthru
      _
    // Predicated region
    $region10: #{tpu_custom_call.1} parent=1 // pred_check
      _
    $region11: #{tpu_custom_call.1} parent=1 // pred_check_branch
      %36 = sbr.rel (0) target = $region13
    $region12: #{tpu_custom_call.1} parent=1 // pred_region
      _
    $region13: #{tpu_custom_call.1} parent=1 // pred_fallthru
      _
    // Predicated region
    $region14: #{tpu_custom_call.1} parent=1 // pred_check
      _
    $region15: #{tpu_custom_call.1} parent=1 // pred_check_branch
      %38 = sbr.rel (0) target = $region17
    $region16: #{tpu_custom_call.1} parent=1 // pred_region
      %39 = dma.done [#allocation3], 256
    $region17: #{tpu_custom_call.1} parent=1 // pred_fallthru
      _
    // Predicated region
    $region18: #{tpu_custom_call.1} parent=1 // pred_check
      _
    $region19: #{tpu_custom_call.1} parent=1 // pred_check_branch
      %41 = sbr.rel (0) target = $region21
    $region20: #{tpu_custom_call.1} parent=1 // pred_region
      %42 = dma.done [#allocation6], 512
    $region21: #{tpu_custom_call.1} parent=1 // pred_fallthru
      _
    %v43 = vld [vmem:[#allocation2] sm:$0xff]
    %v44 = vld [vmem:[#allocation2 + $0x8] sm:$0xff]
    %v45 = vld [vmem:[#allocation5] sm:$0xff]
    %v46 = vld [vmem:[#allocation5 + $0x8] sm:$0xff]
    %v47 = vld [vmem:[#allocation5 + $0x10] sm:$0xff]
    %v48 = vld [vmem:[#allocation5 + $0x18] sm:$0xff]
    %v49 = vld [vmem:[%s2] sm:$0x1]
    %v51 = vlaneseq
    %v52 = vshrl.u32 %v51, 7
    %v53 = vsub.s32 0, %v52
    %v54 = vrot.slane %v49, %v53
    %vm56 = vcmask 261120
    %v58 = vsel %vm56, %v43, 0
    %v61 = vsel %vm56, %v44, 0
    %63 = vmatprep.subr.mxu0 0.0
    %64 = vmatpush1.msra.mxu0 %v45
    %65 = vmatprep.subr.mxu0 0.0
    %66 = vmatpush1.msra.mxu0 %v46
    %67 = vmatprep.subr.mxu0 0.0
    %68 = vmatpush1.msra.mxu0 %v47
    %69 = vmatprep.subr.mxu0 0.0
    %70 = vmatpush1.msra.mxu0 %v48
    %71 = vmatprep.subr.mxu0 0.0
    %72 = vmatpush1.msra.mxu0 0.0
    %73 = vmatprep.subr.mxu0 0.0
    %74 = vmatpush1.msra.mxu0 0.0
    %75 = vmatprep.subr.mxu0 0.0
    %76 = vmatpush1.msra.mxu0 0.0
    %77 = vmatprep.subr.mxu0 0.0
    %78 = vmatpush1.msra.mxu0 0.0
    %79 = vmatprep.subr.mxu0 0.0
    %80 = vmatpush1.msra.mxu0 0.0
    %81 = vmatprep.subr.mxu0 0.0
    %82 = vmatpush1.msra.mxu0 0.0
    %83 = vmatprep.subr.mxu0 0.0
    %84 = vmatpush1.msra.mxu0 0.0
    %85 = vmatprep.subr.mxu0 0.0
    %86 = vmatpush1.msra.mxu0 0.0
    %87 = vmatprep.subr.mxu0 0.0
    %88 = vmatpush1.msra.mxu0 0.0
    %89 = vmatprep.subr.mxu0 0.0
    %90 = vmatpush1.msra.mxu0 0.0
    %91 = vmatprep.subr.mxu0 0.0
    %92 = vmatpush1.msra.mxu0 0.0
    %93 = vmatprep.subr.mxu0 0.0
    %94 = vmatpush1.msra.mxu0 0.0
    %95 = vmatprep.subr.mxu0 0.0
    %96 = vmatpush1.msra.mxu0 0.0
    %97 = vmatprep.subr.mxu0 0.0
    %98 = vmatpush1.msra.mxu0 0.0
    %99 = vmatprep.subr.mxu0 0.0
    %100 = vmatpush1.msra.mxu0 0.0
    %101 = vmatprep.subr.mxu0 0.0
    %102 = vmatpush1.msra.mxu0 0.0
    %103 = vmatprep.subr.mxu0 0.0
    %104 = vmatpush1.msra.mxu0 0.0
    %105 = vmatprep.subr.mxu0 0.0
    %106 = vmatpush1.msra.mxu0 0.0
    %107 = vmatprep.subr.mxu0 0.0
    %108 = vmatpush1.msra.mxu0 0.0
    %109 = vmatprep.subr.mxu0 0.0
    %110 = vmatpush1.msra.mxu0 0.0
    %111 = vmatprep.subr.mxu0 0.0
    %112 = vmatpush1.msra.mxu0 0.0
    %113 = vmatprep.subr.mxu0 0.0
    %114 = vmatpush1.msra.mxu0 0.0
    %115 = vmatprep.subr.mxu0 0.0
    %116 = vmatpush1.msra.mxu0 0.0
    %117 = vmatprep.subr.mxu0 0.0
    %118 = vmatpush1.msra.mxu0 0.0
    %119 = vmatprep.subr.mxu0 0.0
    %120 = vmatpush1.msra.mxu0 0.0
    %121 = vmatprep.subr.mxu0 0.0
    %122 = vmatpush1.msra.mxu0 0.0
    %123 = vmatprep.subr.mxu0 0.0
    %124 = vmatpush1.msra.mxu0 0.0
    %125 = vmatprep.subr.mxu0 0.0
    %126 = vmatpush1.msra.mxu0 0.0
    %127 = vmatprep.mubr.f32.mxu0 0.0
    %128 = vmatmul.mubr.f32.gmra.mrb[0].mxu0 %v58
    %v129 = vpop.f32.mrb[0].mxu0
    %v130 = vadd.f32 %v54, %v129
    %v131 = vpop.f32.mrb[0].mxu0
    %132 = vmatprep.mubr.f32.mxu0 0.0
    %133 = vmatmul.mubr.f32.gmra.mrb[0].mxu0 %v61
    %v134 = vpop.f32.mrb[0].mxu0
    %v135 = vadd.f32 %v54, %v134
    %v136 = vpop.f32.mrb[0].mxu0
    %137 = vdwg.mxu0
    %vm138 = vcmask 785408
    %139 = vst.msk [vmem:[#allocation7] sm:$0xff] %vm138, %v130
    %140 = vst.msk [vmem:[#allocation7 + $0x8] sm:$0xff] %vm138, %v135
    // Predicated region
    $region22: #{tpu_custom_call.1} parent=1 // pred_check
      _
    $region23: #{tpu_custom_call.1} parent=1 // pred_check_branch
      %142 = sbr.rel (0) target = $region25
    $region24: #{tpu_custom_call.1} parent=1 // pred_region
      %s144 = ssub.s32 256, 256
      %145 = vsyncadd [#allocation4], %s144
      %s146 = sshll.u32 [#allocation7], 4
      %s147 = int_to_ptr.vmem [resolvable:$true] %s146
      %152 = dma.vmem_to_hbm [thread:$0]  %s147, 256, %s3, [#allocation4], 128, 128, 8
    $region25: #{tpu_custom_call.1} parent=1 // pred_fallthru
      _
    // Predicated region
    $region26: #{tpu_custom_call.1} parent=1 // pred_check
      _
    $region27: #{tpu_custom_call.1} parent=1 // pred_check_branch
      %154 = sbr.rel (0) target = $region29
    $region28: #{tpu_custom_call.1} parent=1 // pred_region
      %155 = dma.done [#allocation4], 256
    $region29: #{tpu_custom_call.1} parent=1 // pred_fallthru
      _
    %156 = vsyncpa [#allocation3], 1
    %157 = vsyncpa [#allocation6], 1
    %158 = vsyncpa [#allocation4], 1

</llo_original>
